<compile_context>
chip_gen: v5e
topology: v5e:2x2
jax: 0.10.0
libtpu: 0.0.40
codegen_flags: <defaults>
</compile_context>

<pallas_src>
import functools

import jax
import jax.numpy as jnp
from jax.experimental import pallas as pl
from jax.experimental.pallas import tpu as pltpu


# ----------------------------- helpers ------------------------------

def _rup(c, m=128):
    """Round channel count up to a multiple of m (lane-dense)."""
    return ((c + m - 1) // m) * m


def _pick_tile(dim, candidates):
    for c in candidates:
        if dim >= c and dim % c == 0:
            return c
    return dim  # fall back to full dim (legal: block equals full array dim)


def _pick_tn(n):
    if n <= 640:
        return n
    for c in (640, 512, 384, 256, 128):
        if n % c == 0:
            return c
    return n


def _pick_tk(k):
    if k <= 1024:
        return k
    for c in (1024, 512, 256, 128):
        if k % c == 0:
            return c
    return k


# ----------------------------- tiled matmul kernel ------------------------------

def _mm_kernel(x_ref, w_ref, b_ref, o_ref, acc_ref, *, relu6):
    k = pl.program_id(2)

    @pl.when(k == 0)
    def _():
        acc_ref[...] = jnp.zeros_like(acc_ref)

    acc_ref[...] += jnp.dot(x_ref[...], w_ref[...],
                            preferred_element_type=jnp.float32)

    @pl.when(k == pl.num_programs(2) - 1)
    def _():
        out = acc_ref[...] + b_ref[...]
        if relu6:
            out = jnp.clip(out, 0.0, 6.0)
        o_ref[...] = out.astype(o_ref.dtype)


def matmul_bias(x, w, b, *, relu6=False):
    """x:[M,K] @ w:[K,N] + b:[1,N] with optional ReLU6. Tiled over (M, N, K)."""
    M, K = x.shape
    N = w.shape[1]
    tm = _pick_tile(M, (1024, 512, 256, 128, 64, 32, 16, 8))
    tn = _pick_tn(N)
    tk = _pick_tk(K)
    grid = (M // tm, N // tn, K // tk)

    # rough double-buffered VMEM footprint -> explicit limit with headroom
    est = 2 * (tm * tk + tk * tn) * 2          # inputs (bf16, dbl-buffered)
    est += 2 * tm * tn * 2                     # output (bf16, dbl-buffered)
    est += tm * tn * 4                         # f32 accumulator scratch
    est += 2 * tn * 4 * 2                      # bias
    vmem_limit = int(min(max(est * 2 + (4 << 20), 16 << 20), 40 << 20))

    x_spec = pl.BlockSpec((tm, tk), lambda i, j, k: (i, k))
    w_spec = pl.BlockSpec((tk, tn), lambda i, j, k: (k, j))
    b_spec = pl.BlockSpec((1, tn), lambda i, j, k: (0, j))
    o_spec = pl.BlockSpec((tm, tn), lambda i, j, k: (i, j))
    cp = pltpu.CompilerParams(
        dimension_semantics=("parallel", "parallel", "arbitrary"),
        vmem_limit_bytes=vmem_limit)

    return pl.pallas_call(
        functools.partial(_mm_kernel, relu6=relu6),
        out_shape=jax.ShapeDtypeStruct((M, N), jnp.bfloat16),
        grid=grid,
        in_specs=[x_spec, w_spec, b_spec], out_specs=o_spec,
        scratch_shapes=[pltpu.VMEM((tm, tn), jnp.float32)],
        compiler_params=cp,
    )(x, w, b)


# -------------------- fused inverted-residual block (stride 1) --------------------

def _fused_block_kernel(*refs, H, W, has_expand, use_res):
    if has_expand:
        (x_ref, we_ref, be_ref, wd_ref, bd_ref, wp_ref, bp_ref,
         o_ref, epad_ref, d2d_ref) = refs
    else:
        (x_ref, wd_ref, bd_ref, wp_ref, bp_ref,
         o_ref, epad_ref, d2d_ref) = refs

    # Zero the halo scratch: the 1-px border must be zero; the interior is fully
    # overwritten below. (Zeroed every step so "parallel" batch semantics is safe.)
    epad_ref[...] = jnp.zeros_like(epad_ref)

    x = x_ref[0]                                     # [H*W, Cin] bf16
    if has_expand:
        e = jnp.dot(x, we_ref[...], preferred_element_type=jnp.float32)
        e = jnp.clip(e + be_ref[...], 0.0, 6.0).astype(jnp.bfloat16)
    else:
        e = x                                        # t == 1: no expand conv
    hid = e.shape[1]

    # Scatter rows into the zero-padded VMEM scratch (expanded act never hits HBM).
    for h in range(H):
        epad_ref[1 + h, 1:W + 1, :] = e[h * W:(h + 1) * W, :]

    # Depthwise 3x3 (stride 1, padding 1) + ReLU6; the 9 taps are contiguous slices
    # of the padded VMEM scratch. bf16 multiplies, f32 accumulation.
    wd = wd_ref[...]                                 # [9, hid] bf16
    acc = jnp.zeros((H, W, hid), jnp.float32)
    for di in range(3):
        for dj in range(3):
            tap = epad_ref[di:di + H, dj:dj + W, :]
            acc = acc + (tap * wd[di * 3 + dj]).astype(jnp.float32)
    d = jnp.clip(acc + bd_ref[0], 0.0, 6.0).astype(jnp.bfloat16)   # [H, W, hid]

    # Re-flatten to [H*W, hid] (row stores; avoids in-kernel reshape lowering).
    for h in range(H):
        d2d_ref[h * W:(h + 1) * W, :] = d[h]

    # Project 1x1 (+ residual: the block input itself).
    out = jnp.dot(d2d_ref[...], wp_ref[...], preferred_element_type=jnp.float32)
    out = out + bp_ref[...]
    if use_res:
        out = out + x.astype(jnp.float32)
    o_ref[0] = out.astype(o_ref.dtype)


def fused_inverted_residual(x2d, blk, H, W):
    """One pallas_call for expand -> depthwise3x3(s=1) -> project (+ residual)."""
    N, HW, Cin = x2d.shape
    has_expand = 'expand' in blk
    wd, bd, _stride = blk['dw']
    wp, bp = blk['project']
    hid = wd.shape[1]
    Cout = wp.shape[1]
    use_res = bool(blk['use_res'])

    args = [x2d]
    in_specs = [pl.BlockSpec((1, HW, Cin), lambda n: (n, 0, 0))]
    if has_expand:
        we, be = blk['expand']
        args += [we, be]
        in_specs += [pl.BlockSpec((Cin, hid), lambda n: (0, 0)),
                     pl.BlockSpec((1, hid), lambda n: (0, 0))]
    args += [wd, bd, wp, bp]
    in_specs += [pl.BlockSpec((9, hid), lambda n: (0, 0)),
                 pl.BlockSpec((1, hid), lambda n: (0, 0)),
                 pl.BlockSpec((hid, Cout), lambda n: (0, 0)),
                 pl.BlockSpec((1, Cout), lambda n: (0, 0))]

    kernel = functools.partial(_fused_block_kernel, H=H, W=W,
                               has_expand=has_expand, use_res=use_res)
    return pl.pallas_call(
        kernel,
        out_shape=jax.ShapeDtypeStruct((N, HW, Cout), jnp.bfloat16),
        grid=(N,),
        in_specs=in_specs,
        out_specs=pl.BlockSpec((1, HW, Cout), lambda n: (n, 0, 0)),
        scratch_shapes=[pltpu.VMEM((H + 2, W + 2, hid), jnp.bfloat16),
                        pltpu.VMEM((HW, hid), jnp.bfloat16)],
        compiler_params=pltpu.CompilerParams(
            dimension_semantics=("parallel",)),
    )(*args)


# -------------------- stride-2 depthwise (un-fused path) --------------------

def _dw_s2_kernel(x00_ref, x01_ref, x10_ref, x11_ref, w_ref, b_ref, o_ref):
    # Each x_pq: [1, Hh, Wh, tc] where x_pq[h, w] = padded_input[2h+p, 2w+q].
    # Tap (di, dj) of output (i, j) is padded[2i+di, 2j+dj]
    #   = x_{di%2, dj%2}[i + di//2, j + dj//2]  -> contiguous slices only.
    Ho, Wo = o_ref.shape[1], o_ref.shape[2]
    xs = {(0, 0): x00_ref, (0, 1): x01_ref, (1, 0): x10_ref, (1, 1): x11_ref}
    acc = jnp.zeros(o_ref.shape, jnp.float32)
    for di in range(3):
        for dj in range(3):
            p, r0 = di % 2, di // 2
            q, c0 = dj % 2, dj // 2
            tap = xs[(p, q)][:, r0:r0 + Ho, c0:c0 + Wo, :]
            acc = acc + (tap * w_ref[di * 3 + dj]).astype(jnp.float32)
    o_ref[...] = jnp.clip(acc + b_ref[0], 0.0, 6.0).astype(o_ref.dtype)


def depthwise3x3_s2(x_nhwc, w9c, b2c):
    """Depthwise 3x3, stride 2, padding 1, + folded BN bias + ReLU6."""
    N, H, W, C = x_nhwc.shape
    assert H % 2 == 0 and W % 2 == 0, "stride-2 depthwise expects even spatial dims"
    Ho, Wo = H // 2, W // 2
    # TODO(synk): move the pad + parity split in-kernel (needs strided VMEM taps).
    xp = jnp.pad(x_nhwc, ((0, 0), (1, 1), (1, 1), (0, 0)))
    phases = [xp[:, p::2, q::2, :] for p in (0, 1) for q in (0, 1)]
    Hh, Wh = phases[0].shape[1], phases[0].shape[2]

    # adaptive channel tile: full C when the (double-buffered) tiles stay small
    per_ch = (4 * Hh * Wh + Ho * Wo) * 2 * 2
    if C * per_ch <= 8 * 1024 * 1024:
        tc = C
    elif C % 128 == 0:
        tc = 128
    else:
        tc = C

    ph_spec = pl.BlockSpec((1, Hh, Wh, tc), lambda n, c: (n, 0, 0, c))
    w_spec = pl.BlockSpec((9, tc), lambda n, c: (0, c))
    b_spec = pl.BlockSpec((1, tc), lambda n, c: (0, c))
    o_spec = pl.BlockSpec((1, Ho, Wo, tc), lambda n, c: (n, 0, 0, c))
    return pl.pallas_call(
        _dw_s2_kernel,
        out_shape=jax.ShapeDtypeStruct((N, Ho, Wo, C), x_nhwc.dtype),
        grid=(N, C // tc),
        in_specs=[ph_spec, ph_spec, ph_spec, ph_spec, w_spec, b_spec],
        out_specs=o_spec,
        compiler_params=pltpu.CompilerParams(
            dimension_semantics=("parallel", "parallel")),
    )(*phases, w9c, b2c)


# -------------------- fused global average pool + classifier --------------------

def _pool_fc_kernel(x_ref, w_ref, b_ref, o_ref):
    pooled = jnp.mean(x_ref[...].astype(jnp.float32), axis=1)      # [N, C]
    o_ref[...] = (jnp.dot(pooled.astype(jnp.bfloat16), w_ref[...],
                          preferred_element_type=jnp.float32) + b_ref[...])


def avgpool_classifier(x2d, w, b):
    """Adaptive average pool to (1,1) fused with the Linear(1280, num_class)."""
    N, HW, C = x2d.shape
    nc = w.shape[1]
    return pl.pallas_call(
        _pool_fc_kernel,
        out_shape=jax.ShapeDtypeStruct((N, nc), jnp.float32),
        grid=(1,),
        in_specs=[pl.BlockSpec((N, HW, C), lambda i: (0, 0, 0)),
                  pl.BlockSpec((C, nc), lambda i: (0, 0)),
                  pl.BlockSpec((1, nc), lambda i: (0, 0))],
        out_specs=pl.BlockSpec((N, nc), lambda i: (0, 0)),
    )(x2d, w, b)


# ------------------------------ stem / params ------------------------------

def conv3x3_s2_stem(x_nhwc, w_mat, b):
    """Stem 3x3 conv, stride 2, padding 1 via im2col + tiled Pallas matmul + ReLU6."""
    N, H, W, C = x_nhwc.shape
    Ho, Wo = H // 2, W // 2
    xp = jnp.pad(x_nhwc, ((0, 0), (1, 1), (1, 1), (0, 0)))
    taps = []
    for di in range(3):
        for dj in range(3):
            taps.append(xp[:, di:di + 2 * Ho - 1:2, dj:dj + 2 * Wo - 1:2, :])
    cols = jnp.stack(taps, 3).reshape(N * Ho * Wo, 9 * C)
    kp = w_mat.shape[0]
    cols = jnp.pad(cols, ((0, 0), (0, kp - 9 * C))).astype(jnp.bfloat16)
    out = matmul_bias(cols, w_mat, b, relu6=True)
    return out.reshape(N, Ho, Wo, w_mat.shape[1])


class KeyGen:
    def __init__(self, key):
        self.key = key
        self.i = 0

    def __call__(self):
        self.i += 1
        return jax.random.fold_in(self.key, self.i)


def _bn_fold(key, cout):
    k1, k2, k3, k4 = jax.random.split(key, 4)
    gamma = 1.0 + 0.1 * jax.random.normal(k1, (cout,), jnp.float32)
    beta = 0.1 * jax.random.normal(k2, (cout,), jnp.float32)
    mean = 0.1 * jax.random.normal(k3, (cout,), jnp.float32)
    var = 1.0 + 0.1 * jnp.abs(jax.random.normal(k4, (cout,), jnp.float32))
    scale = gamma * jax.lax.rsqrt(var + 1e-5)
    bias = beta - mean * scale
    return scale, bias


# torchvision MobileNetV2 (width_mult=1.0) inverted residual settings
_SETTINGS = [
    # t, c, n, s
    (1, 16, 1, 1),
    (6, 24, 2, 2),
    (6, 32, 3, 2),
    (6, 64, 4, 2),
    (6, 96, 3, 1),
    (6, 160, 3, 2),
    (6, 320, 1, 1),
]


def build_params(key, num_class):
    # TODO(synk): deterministic synthetic weights; the original module loads
    # IMAGENET1K_V1 pretrained weights from a checkpoint, which we do not do.
    kg = KeyGen(key)
    w_std = 0.08

    def conv_w(shape):
        return w_std * jax.random.normal(kg(), shape, jnp.float32)

    def pad_mat(w, kp, npad):
        out = jnp.zeros((kp, npad), jnp.float32)
        return out.at[:w.shape[0], :w.shape[1]].set(w)

    def pad_bias(v, npad):
        out = jnp.zeros((1, npad), jnp.float32)
        return out.at[0, :v.shape[0]].set(v)

    params = {}

    # stem: 3x3 conv 3->32, stride 2 (+ BN + ReLU6), folded; im2col [27,32]->[32,128]
    w = conv_w((27, 32))
    sc, bi = _bn_fold(kg(), 32)
    params['stem'] = (pad_mat(w * sc[None, :], 32, _rup(32)).astype(jnp.bfloat16),
                      pad_bias(bi, _rup(32)))

    blocks = []
    cin, cin_p = 32, _rup(32)
    for t, c, n, s in _SETTINGS:
        c_p = _rup(c)
        for i in range(n):
            stride = s if i == 0 else 1
            hidden = cin * t
            hidden_p = _rup(hidden)
            blk = {}
            if t != 1:
                w = conv_w((cin, hidden))
                sc, bi = _bn_fold(kg(), hidden)
                blk['expand'] = (
                    pad_mat(w * sc[None, :], cin_p, hidden_p).astype(jnp.bfloat16),
                    pad_bias(bi, hidden_p))
            w = conv_w((9, hidden))
            sc, bi = _bn_fold(kg(), hidden)
            wd = jnp.zeros((9, hidden_p), jnp.float32).at[:, :hidden].set(
                w * sc[None, :]).astype(jnp.bfloat16)
            blk['dw'] = (wd, pad_bias(bi, hidden_p), stride)
            w = conv_w((hidden, c))
            sc, bi = _bn_fold(kg(), c)
            blk['project'] = (
                pad_mat(w * sc[None, :], hidden_p, c_p).astype(jnp.bfloat16),
                pad_bias(bi, c_p))
            blk['use_res'] = (stride == 1 and cin == c)
            blocks.append(blk)
            cin, cin_p = c, c_p
    params['blocks'] = blocks

    # head conv: 1x1 320 -> 1280 (+ BN + ReLU6), folded
    w = conv_w((320, 1280))
    sc, bi = _bn_fold(kg(), 1280)
    params['head_conv'] = (
        pad_mat(w * sc[None, :], cin_p, 1280).astype(jnp.bfloat16),
        pad_bias(bi, 1280))

    # replaced classifier: Linear(1280, num_class) (fused with the avg-pool kernel)
    wc = (w_std * jax.random.normal(kg(), (1280, num_class), jnp.float32)
          ).astype(jnp.bfloat16)
    bc = jnp.zeros((1, num_class), jnp.float32)
    params['classifier'] = (wc, bc)
    return params


# ------------------------------ forward ------------------------------

def mobilenet_v2_forward(params, x_nchw):
    # NCHW (PyTorch) -> NHWC (kernel layout)
    x = jnp.transpose(x_nchw, (0, 2, 3, 1)).astype(jnp.float32)

    # stem
    ws, bs = params['stem']
    x = conv3x3_s2_stem(x, ws, bs)                      # bf16, C padded to 128
    N, H, W, C = x.shape
    x2d = x.reshape(N, H * W, C)

    # inverted residual blocks
    for blk in params['blocks']:
        wd, bd, stride = blk['dw']
        if stride == 1:
            # fused expand -> depthwise -> project (+ residual), all in VMEM
            x2d = fused_inverted_residual(x2d, blk, H, W)
        else:
            # un-fused stride-2 path
            Cin = x2d.shape[2]
            hid = wd.shape[1]
            e2d = x2d.reshape(N * H * W, Cin)
            if 'expand' in blk:
                we, be = blk['expand']
                e2d = matmul_bias(e2d, we, be, relu6=True)
            d = depthwise3x3_s2(e2d.reshape(N, H, W, hid), wd, bd)
            H, W = d.shape[1], d.shape[2]
            wp, bp = blk['project']
            p2d = matmul_bias(d.reshape(N * H * W, hid), wp, bp, relu6=False)
            x2d = p2d.reshape(N, H * W, wp.shape[1])

    # head 1x1 conv + ReLU6
    wh, bh = params['head_conv']
    C = x2d.shape[2]
    h2d = matmul_bias(x2d.reshape(N * H * W, C), wh, bh, relu6=True)
    x2d = h2d.reshape(N, H * W, wh.shape[1])

    # fused adaptive avg pool (1,1) + classifier
    wc, bc = params['classifier']
    logits = avgpool_classifier(x2d, wc, bc)            # [N, num_class] f32
    return logits


if __name__ == "__main__":
    num_class = 10
    # small input consistent with an image model: NCHW [2, 3, 32, 32]
    x = jax.random.normal(jax.random.PRNGKey(0), (2, 3, 32, 32), jnp.float32)
    params = build_params(jax.random.PRNGKey(42), num_class)

    logits = mobilenet_v2_forward(params, x)
    logits = jax.block_until_ready(logits)

    assert logits.shape == (2, num_class), logits.shape
    assert bool(jnp.all(jnp.isfinite(logits)))
    print("KERNEL_OK")
</pallas_src>

<mosaic_0001>
module attributes {stable_mosaic.version = 11 : i64} {
  func.func @_mm_kernel(%arg0: i32, %arg1: i32, %arg2: i32, %arg3: memref<512x32xbf16, #tpu.memory_space<vmem>>, %arg4: memref<32x128xbf16, #tpu.memory_space<vmem>>, %arg5: memref<1x128xf32, #tpu.memory_space<vmem>>, %arg6: memref<512x128xbf16, #tpu.memory_space<vmem>>, %arg7: memref<512x128xf32, #tpu.memory_space<vmem>>) attributes {dimension_semantics = [#tpu.dimension_semantics<parallel>, #tpu.dimension_semantics<parallel>, #tpu.dimension_semantics<arbitrary>], iteration_bounds = array<i64: 1, 1, 1>, scalar_prefetch = 0 : i64, scratch_operands = 1 : i64, tpu.core_type = #tpu.core_type<tc>, window_params = [{transform_indices = @transform_0, window_bounds = array<i64: 512, 32>}, {transform_indices = @transform_1, window_bounds = array<i64: 32, 128>}, {transform_indices = @transform_2, window_bounds = array<i64: 1, 128>}, {transform_indices = @transform_3, window_bounds = array<i64: 512, 128>}]} {
    %c0_i32 = arith.constant 0 : i32
    %0 = arith.cmpi eq, %arg2, %c0_i32 : i32
    %1 = arith.extui %0 : i1 to i32
    %c0_i32_0 = arith.constant 0 : i32
    %2 = arith.cmpi ne, %1, %c0_i32_0 : i32
    scf.if %2 {
      %cst_10 = arith.constant 0.000000e+00 : f32
      %12 = vector.broadcast %cst_10 : f32 to vector<512x128xf32>
      %c0_11 = arith.constant 0 : index
      %c0_12 = arith.constant 0 : index
      %13 = vector.load %arg7[%c0_11, %c0_12] : memref<512x128xf32, #tpu.memory_space<vmem>>, vector<512x128xf32>
      tpu.vector_store %arg7[%c0_11, %c0_12], %12 {strides = array<i32>} : memref<512x128xf32, #tpu.memory_space<vmem>>, vector<512x128xf32>,
    } else {
    }
    %c0 = arith.constant 0 : index
    %c0_1 = arith.constant 0 : index
    %3 = vector.load %arg7[%c0, %c0_1] : memref<512x128xf32, #tpu.memory_space<vmem>>, vector<512x128xf32>
    %c0_2 = arith.constant 0 : index
    %c0_3 = arith.constant 0 : index
    %4 = vector.load %arg3[%c0_2, %c0_3] : memref<512x32xbf16, #tpu.memory_space<vmem>>, vector<512x32xbf16>
    %c0_4 = arith.constant 0 : index
    %c0_5 = arith.constant 0 : index
    %5 = vector.load %arg4[%c0_4, %c0_5] : memref<32x128xbf16, #tpu.memory_space<vmem>>, vector<32x128xbf16>
    %cst = arith.constant dense<0.000000e+00> : vector<512x128xf32>
    %6 = tpu.matmul %4, %5, %cst {dimension_numbers = #tpu.dot_dimension_numbers<[1], [0], [0], [1], [0, 0, 1, 1], [], []>} : vector<512x32xbf16>, vector<32x128xbf16>, vector<512x128xf32> -> vector<512x128xf32>
    %7 = arith.addf %3, %6 : vector<512x128xf32>
    %c0_6 = arith.constant 0 : index
    %c0_7 = arith.constant 0 : index
    %8 = vector.load %arg7[%c0_6, %c0_7] : memref<512x128xf32, #tpu.memory_space<vmem>>, vector<512x128xf32>
    tpu.vector_store %arg7[%c0_6, %c0_7], %7 {strides = array<i32>} : memref<512x128xf32, #tpu.memory_space<vmem>>, vector<512x128xf32>,
    %c0_i32_8 = arith.constant 0 : i32
    %9 = arith.cmpi eq, %arg2, %c0_i32_8 : i32
    %10 = arith.extui %9 : i1 to i32
    %c0_i32_9 = arith.constant 0 : i32
    %11 = arith.cmpi ne, %10, %c0_i32_9 : i32
    scf.if %11 {
      %c0_10 = arith.constant 0 : index
      %c0_11 = arith.constant 0 : index
      %12 = vector.load %arg7[%c0_10, %c0_11] : memref<512x128xf32, #tpu.memory_space<vmem>>, vector<512x128xf32>
      %c0_12 = arith.constant 0 : index
      %c0_13 = arith.constant 0 : index
      %13 = vector.load %arg5[%c0_12, %c0_13] : memref<1x128xf32, #tpu.memory_space<vmem>>, vector<1x128xf32>
      %14 = vector.broadcast %13 : vector<1x128xf32> to vector<512x128xf32>
      %15 = arith.addf %12, %14 : vector<512x128xf32>
      %cst_14 = arith.constant 0.000000e+00 : f32
      %cst_15 = arith.constant 6.000000e+00 : f32
      %16 = vector.broadcast %cst_14 : f32 to vector<512x128xf32>
      %17 = arith.maximumf %16, %15 : vector<512x128xf32>
      %18 = vector.broadcast %cst_15 : f32 to vector<512x128xf32>
      %19 = arith.minimumf %18, %17 : vector<512x128xf32>
      %20 = arith.truncf %19 : vector<512x128xf32> to vector<512x128xbf16>
      %c0_16 = arith.constant 0 : index
      %c0_17 = arith.constant 0 : index
      %21 = vector.load %arg6[%c0_16, %c0_17] : memref<512x128xbf16, #tpu.memory_space<vmem>>, vector<512x128xbf16>
      tpu.vector_store %arg6[%c0_16, %c0_17], %20 {strides = array<i32>} : memref<512x128xbf16, #tpu.memory_space<vmem>>, vector<512x128xbf16>,
    } else {
    }
    return
  }
  func.func @transform_0(%arg0: i32, %arg1: i32, %arg2: i32) -> (i32, i32) {
    %c0_i32 = arith.constant 0 : i32
    return %arg0, %arg2 : i32, i32
  }
  func.func @transform_1(%arg0: i32, %arg1: i32, %arg2: i32) -> (i32, i32) {
    %c0_i32 = arith.constant 0 : i32
    return %arg2, %arg1 : i32, i32
  }
  func.func @transform_2(%arg0: i32, %arg1: i32, %arg2: i32) -> (i32, i32) {
    %c0_i32 = arith.constant 0 : i32
    %c0_i32_0 = arith.constant 0 : i32
    return %c0_i32, %arg1 : i32, i32
  }
  func.func @transform_3(%arg0: i32, %arg1: i32, %arg2: i32) -> (i32, i32) {
    %c0_i32 = arith.constant 0 : i32
    return %arg0, %arg1 : i32, i32
  }
}

</mosaic_0001>

<llo_original>
// kernel: tpu_custom_call.1
$region0: #{tpu_custom_call.1}
  #allocation0 [shape = 'u32[]', space=smem, size = 0x4, offset = 0x4, fixed_abs, tag = 'smem constant byte address 0x4 - core index']
  #allocation1 [shape = 'u32[72,128]{1,0:T(1,128)}', space=vmem, size = 0x9000, scoped, tag = 'internal scratch']
  #allocation2 [shape = 'f32[512,128]{1,0:T(8,128)}', space=vmem, size = 0x40000, scoped, tag = 'scratch operand']
  %s0 = inlined_call_operand.vmem [shape: bf16[512,32], index: 0, kind: input, shape index: {}]
  %s1 = inlined_call_operand.vmem [shape: bf16[32,128], index: 1, kind: input, shape index: {}]
  %s2 = inlined_call_operand.vmem [shape: f32[1,128], index: 2, kind: input, shape index: {}]
  %s3 = inlined_call_operand.hbm [shape: bf16[512,128], index: 3, kind: output, shape index: {}]
  %s4 = sld [smem:[#allocation0]]
  $region30: #{tpu_custom_call.1} parent=0
    _
  %s6 = ssub.s32 1, %s4
  %s7 = scalar_select 0, %s6, %s4
  $region1: #{tpu_custom_call.1} parent=0
    #allocation3 [shape = 'u8[131072]{0}', space=vmem, size = 0x20000, scoped, tag = 'output window, operand 0, single buffered']
    #allocation4 [shape = 's32[1]{0}', space=sflag, size = 0x4, scoped, tag = 'scoped memory for tpu_custom_call.1']
    %8 = vsyncpa [#allocation4], 0
    // Predicated region
    $region2: #{tpu_custom_call.1} parent=1 // pred_check
      _
    $region3: #{tpu_custom_call.1} parent=1 // pred_check_branch
      %10 = sbr.rel (0) target = $region5
    $region4: #{tpu_custom_call.1} parent=1 // pred_region
      _
    $region5: #{tpu_custom_call.1} parent=1 // pred_fallthru
      _
    // Predicated region
    $region6: #{tpu_custom_call.1} parent=1 // pred_check
      _
    $region7: #{tpu_custom_call.1} parent=1 // pred_check_branch
      %12 = sbr.rel (0) target = $region9
    $region8: #{tpu_custom_call.1} parent=1 // pred_region
      _
    $region9: #{tpu_custom_call.1} parent=1 // pred_fallthru
      _
    // Predicated region
    $region10: #{tpu_custom_call.1} parent=1 // pred_check
      _
    $region11: #{tpu_custom_call.1} parent=1 // pred_check_branch
      %14 = sbr.rel (0) target = $region13
    $region12: #{tpu_custom_call.1} parent=1 // pred_region
      _
    $region13: #{tpu_custom_call.1} parent=1 // pred_fallthru
      _
    %p16 = scmp.eq.s32.totalorder 0, 0
    // Predicated region
    $region14: #{tpu_custom_call.1} parent=1 // pred_check
      %p17 = pneg %p16
    $region15: #{tpu_custom_call.1} parent=1 // pred_check_branch
      %19 = sbr.rel (%p17) target = $region17
    $region16: #{tpu_custom_call.1} parent=1 // pred_region
      %20 = vst [vmem:[#allocation2] sm:$0xff] 0.0
      %21 = vst [vmem:[#allocation2 + $0x8] sm:$0xff] 0.0
      %22 = vst [vmem:[#allocation2 + $0x10] sm:$0xff] 0.0
      %23 = vst [vmem:[#allocation2 + $0x18] sm:$0xff] 0.0
      %24 = vst [vmem:[#allocation2 + $0x20] sm:$0xff] 0.0
      %25 = vst [vmem:[#allocation2 + $0x28] sm:$0xff] 0.0
      %26 = vst [vmem:[#allocation2 + $0x30] sm:$0xff] 0.0
      %27 = vst [vmem:[#allocation2 + $0x38] sm:$0xff] 0.0
      %28 = vst [vmem:[#allocation2 + $0x40] sm:$0xff] 0.0
      %29 = vst [vmem:[#allocation2 + $0x48] sm:$0xff] 0.0
      %30 = vst [vmem:[#allocation2 + $0x50] sm:$0xff] 0.0
      %31 = vst [vmem:[#allocation2 + $0x58] sm:$0xff] 0.0
      %32 = vst [vmem:[#allocation2 + $0x60] sm:$0xff] 0.0
      %33 = vst [vmem:[#allocation2 + $0x68] sm:$0xff] 0.0
      %34 = vst [vmem:[#allocation2 + $0x70] sm:$0xff] 0.0
      %35 = vst [vmem:[#allocation2 + $0x78] sm:$0xff] 0.0
      %36 = vst [vmem:[#allocation2 + $0x80] sm:$0xff] 0.0
      %37 = vst [vmem:[#allocation2 + $0x88] sm:$0xff] 0.0
      %38 = vst [vmem:[#allocation2 + $0x90] sm:$0xff] 0.0
      %39 = vst [vmem:[#allocation2 + $0x98] sm:$0xff] 0.0
      %40 = vst [vmem:[#allocation2 + $0xa0] sm:$0xff] 0.0
      %41 = vst [vmem:[#allocation2 + $0xa8] sm:$0xff] 0.0
      %42 = vst [vmem:[#allocation2 + $0xb0] sm:$0xff] 0.0
      %43 = vst [vmem:[#allocation2 + $0xb8] sm:$0xff] 0.0
      %44 = vst [vmem:[#allocation2 + $0xc0] sm:$0xff] 0.0
      %45 = vst [vmem:[#allocation2 + $0xc8] sm:$0xff] 0.0
      %46 = vst [vmem:[#allocation2 + $0xd0] sm:$0xff] 0.0
      %47 = vst [vmem:[#allocation2 + $0xd8] sm:$0xff] 0.0
      %48 = vst [vmem:[#allocation2 + $0xe0] sm:$0xff] 0.0
      %49 = vst [vmem:[#allocation2 + $0xe8] sm:$0xff] 0.0
      %50 = vst [vmem:[#allocation2 + $0xf0] sm:$0xff] 0.0
      %51 = vst [vmem:[#allocation2 + $0xf8] sm:$0xff] 0.0
      %52 = vst [vmem:[#allocation2 + $0x100] sm:$0xff] 0.0
      %53 = vst [vmem:[#allocation2 + $0x108] sm:$0xff] 0.0
      %54 = vst [vmem:[#allocation2 + $0x110] sm:$0xff] 0.0
      %55 = vst [vmem:[#allocation2 + $0x118] sm:$0xff] 0.0
      %56 = vst [vmem:[#allocation2 + $0x120] sm:$0xff] 0.0
      %57 = vst [vmem:[#allocation2 + $0x128] sm:$0xff] 0.0
      %58 = vst [vmem:[#allocation2 + $0x130] sm:$0xff] 0.0
      %59 = vst [vmem:[#allocation2 + $0x138] sm:$0xff] 0.0
      %60 = vst [vmem:[#allocation2 + $0x140] sm:$0xff] 0.0
      %61 = vst [vmem:[#allocation2 + $0x148] sm:$0xff] 0.0
      %62 = vst [vmem:[#allocation2 + $0x150] sm:$0xff] 0.0
      %63 = vst [vmem:[#allocation2 + $0x158] sm:$0xff] 0.0
      %64 = vst [vmem:[#allocation2 + $0x160] sm:$0xff] 0.0
      %65 = vst [vmem:[#allocation2 + $0x168] sm:$0xff] 0.0
      %66 = vst [vmem:[#allocation2 + $0x170] sm:$0xff] 0.0
      %67 = vst [vmem:[#allocation2 + $0x178] sm:$0xff] 0.0
      %68 = vst [vmem:[#allocation2 + $0x180] sm:$0xff] 0.0
      %69 = vst [vmem:[#allocation2 + $0x188] sm:$0xff] 0.0
      %70 = vst [vmem:[#allocation2 + $0x190] sm:$0xff] 0.0
      %71 = vst [vmem:[#allocation2 + $0x198] sm:$0xff] 0.0
      %72 = vst [vmem:[#allocation2 + $0x1a0] sm:$0xff] 0.0
      %73 = vst [vmem:[#allocation2 + $0x1a8] sm:$0xff] 0.0
      %74 = vst [vmem:[#allocation2 + $0x1b0] sm:$0xff] 0.0
      %75 = vst [vmem:[#allocation2 + $0x1b8] sm:$0xff] 0.0
      %76 = vst [vmem:[#allocation2 + $0x1c0] sm:$0xff] 0.0
      %77 = vst [vmem:[#allocation2 + $0x1c8] sm:$0xff] 0.0
      %78 = vst [vmem:[#allocation2 + $0x1d0] sm:$0xff] 0.0
      %79 = vst [vmem:[#allocation2 + $0x1d8] sm:$0xff] 0.0
      %80 = vst [vmem:[#allocation2 + $0x1e0] sm:$0xff] 0.0
      %81 = vst [vmem:[#allocation2 + $0x1e8] sm:$0xff] 0.0
      %82 = vst [vmem:[#allocation2 + $0x1f0] sm:$0xff] 0.0
      %83 = vst [vmem:[#allocation2 + $0x1f8] sm:$0xff] 0.0
    $region17: #{tpu_custom_call.1} parent=1 // pred_fallthru
      _
    %v84 = vld [vmem:[#allocation2] sm:$0xff]
    %v85 = vld [vmem:[#allocation2 + $0x8] sm:$0xff]
    %v86 = vld [vmem:[#allocation2 + $0x10] sm:$0xff]
    %v87 = vld [vmem:[#allocation2 + $0x18] sm:$0xff]
    %v88 = vld [vmem:[#allocation2 + $0x20] sm:$0xff]
    %v89 = vld [vmem:[#allocation2 + $0x28] sm:$0xff]
    %v90 = vld [vmem:[#allocation2 + $0x30] sm:$0xff]
    %v91 = vld [vmem:[#allocation2 + $0x38] sm:$0xff]
    %v92 = vld [vmem:[#allocation2 + $0x40] sm:$0xff]
    %v93 = vld [vmem:[#allocation2 + $0x48] sm:$0xff]
    %v94 = vld [vmem:[#allocation2 + $0x50] sm:$0xff]
    %v95 = vld [vmem:[#allocation2 + $0x58] sm:$0xff]
    %v96 = vld [vmem:[#allocation2 + $0x60] sm:$0xff]
    %v97 = vld [vmem:[#allocation2 + $0x68] sm:$0xff]
    %v98 = vld [vmem:[#allocation2 + $0x70] sm:$0xff]
    %v99 = vld [vmem:[#allocation2 + $0x78] sm:$0xff]
    %v100 = vld [vmem:[#allocation2 + $0x80] sm:$0xff]
    %v101 = vld [vmem:[#allocation2 + $0x88] sm:$0xff]
    %v102 = vld [vmem:[#allocation2 + $0x90] sm:$0xff]
    %v103 = vld [vmem:[#allocation2 + $0x98] sm:$0xff]
    %v104 = vld [vmem:[#allocation2 + $0xa0] sm:$0xff]
    %v105 = vld [vmem:[#allocation2 + $0xa8] sm:$0xff]
    %v106 = vld [vmem:[#allocation2 + $0xb0] sm:$0xff]
    %v107 = vld [vmem:[#allocation2 + $0xb8] sm:$0xff]
    %v108 = vld [vmem:[#allocation2 + $0xc0] sm:$0xff]
    %v109 = vld [vmem:[#allocation2 + $0xc8] sm:$0xff]
    %v110 = vld [vmem:[#allocation2 + $0xd0] sm:$0xff]
    %v111 = vld [vmem:[#allocation2 + $0xd8] sm:$0xff]
    %v112 = vld [vmem:[#allocation2 + $0xe0] sm:$0xff]
    %v113 = vld [vmem:[#allocation2 + $0xe8] sm:$0xff]
    %v114 = vld [vmem:[#allocation2 + $0xf0] sm:$0xff]
    %v115 = vld [vmem:[#allocation2 + $0xf8] sm:$0xff]
    %v116 = vld [vmem:[#allocation2 + $0x100] sm:$0xff]
    %v117 = vld [vmem:[#allocation2 + $0x108] sm:$0xff]
    %v118 = vld [vmem:[#allocation2 + $0x110] sm:$0xff]
    %v119 = vld [vmem:[#allocation2 + $0x118] sm:$0xff]
    %v120 = vld [vmem:[#allocation2 + $0x120] sm:$0xff]
    %v121 = vld [vmem:[#allocation2 + $0x128] sm:$0xff]
    %v122 = vld [vmem:[#allocation2 + $0x130] sm:$0xff]
    %v123 = vld [vmem:[#allocation2 + $0x138] sm:$0xff]
    %v124 = vld [vmem:[#allocation2 + $0x140] sm:$0xff]
    %v125 = vld [vmem:[#allocation2 + $0x148] sm:$0xff]
    %v126 = vld [vmem:[#allocation2 + $0x150] sm:$0xff]
    %v127 = vld [vmem:[#allocation2 + $0x158] sm:$0xff]
    %v128 = vld [vmem:[#allocation2 + $0x160] sm:$0xff]
    %v129 = vld [vmem:[#allocation2 + $0x168] sm:$0xff]
    %v130 = vld [vmem:[#allocation2 + $0x170] sm:$0xff]
    %v131 = vld [vmem:[#allocation2 + $0x178] sm:$0xff]
    %v132 = vld [vmem:[#allocation2 + $0x180] sm:$0xff]
    %v133 = vld [vmem:[#allocation2 + $0x188] sm:$0xff]
    %v134 = vld [vmem:[#allocation2 + $0x190] sm:$0xff]
    %v135 = vld [vmem:[#allocation2 + $0x198] sm:$0xff]
    %v136 = vld [vmem:[#allocation2 + $0x1a0] sm:$0xff]
    %v137 = vld [vmem:[#allocation2 + $0x1a8] sm:$0xff]
    %v138 = vld [vmem:[#allocation2 + $0x1b0] sm:$0xff]
    %v139 = vld [vmem:[#allocation2 + $0x1b8] sm:$0xff]
    %v140 = vld [vmem:[#allocation2 + $0x1c0] sm:$0xff]
    %v141 = vld [vmem:[#allocation2 + $0x1c8] sm:$0xff]
    %v142 = vld [vmem:[#allocation2 + $0x1d0] sm:$0xff]
    %v143 = vld [vmem:[#allocation2 + $0x1d8] sm:$0xff]
    %v144 = vld [vmem:[#allocation2 + $0x1e0] sm:$0xff]
    %v145 = vld [vmem:[#allocation2 + $0x1e8] sm:$0xff]
    %v146 = vld [vmem:[#allocation2 + $0x1f0] sm:$0xff]
    %v147 = vld [vmem:[#allocation2 + $0x1f8] sm:$0xff]
    %v148 = vld [vmem:[%s0] sm:$0xf]
    %v149 = vld [vmem:[%s0 + $0x4] sm:$0xf]
    %v150 = vld [vmem:[%s0 + $0x8] sm:$0xf]
    %v151 = vld [vmem:[%s0 + $0xc] sm:$0xf]
    %v152 = vld [vmem:[%s0 + $0x10] sm:$0xf]
    %v153 = vld [vmem:[%s0 + $0x14] sm:$0xf]
    %v154 = vld [vmem:[%s0 + $0x18] sm:$0xf]
    %v155 = vld [vmem:[%s0 + $0x1c] sm:$0xf]
    %v156 = vld [vmem:[%s0 + $0x20] sm:$0xf]
    %v157 = vld [vmem:[%s0 + $0x24] sm:$0xf]
    %v158 = vld [vmem:[%s0 + $0x28] sm:$0xf]
    %v159 = vld [vmem:[%s0 + $0x2c] sm:$0xf]
    %v160 = vld [vmem:[%s0 + $0x30] sm:$0xf]
    %v161 = vld [vmem:[%s0 + $0x34] sm:$0xf]
    %v162 = vld [vmem:[%s0 + $0x38] sm:$0xf]
    %v163 = vld [vmem:[%s0 + $0x3c] sm:$0xf]
    %v164 = vld [vmem:[%s0 + $0x40] sm:$0xf]
    %v165 = vld [vmem:[%s0 + $0x44] sm:$0xf]
    %v166 = vld [vmem:[%s0 + $0x48] sm:$0xf]
    %v167 = vld [vmem:[%s0 + $0x4c] sm:$0xf]
    %v168 = vld [vmem:[%s0 + $0x50] sm:$0xf]
    %v169 = vld [vmem:[%s0 + $0x54] sm:$0xf]
    %v170 = vld [vmem:[%s0 + $0x58] sm:$0xf]
    %v171 = vld [vmem:[%s0 + $0x5c] sm:$0xf]
    %v172 = vld [vmem:[%s0 + $0x60] sm:$0xf]
    %v173 = vld [vmem:[%s0 + $0x64] sm:$0xf]
    %v174 = vld [vmem:[%s0 + $0x68] sm:$0xf]
    %v175 = vld [vmem:[%s0 + $0x6c] sm:$0xf]
    %v176 = vld [vmem:[%s0 + $0x70] sm:$0xf]
    %v177 = vld [vmem:[%s0 + $0x74] sm:$0xf]
    %v178 = vld [vmem:[%s0 + $0x78] sm:$0xf]
    %v179 = vld [vmem:[%s0 + $0x7c] sm:$0xf]
    %v180 = vld [vmem:[%s0 + $0x80] sm:$0xf]
    %v181 = vld [vmem:[%s0 + $0x84] sm:$0xf]
    %v182 = vld [vmem:[%s0 + $0x88] sm:$0xf]
    %v183 = vld [vmem:[%s0 + $0x8c] sm:$0xf]
    %v184 = vld [vmem:[%s0 + $0x90] sm:$0xf]
    %v185 = vld [vmem:[%s0 + $0x94] sm:$0xf]
    %v186 = vld [vmem:[%s0 + $0x98] sm:$0xf]
    %v187 = vld [vmem:[%s0 + $0x9c] sm:$0xf]
    %v188 = vld [vmem:[%s0 + $0xa0] sm:$0xf]
    %v189 = vld [vmem:[%s0 + $0xa4] sm:$0xf]
    %v190 = vld [vmem:[%s0 + $0xa8] sm:$0xf]
    %v191 = vld [vmem:[%s0 + $0xac] sm:$0xf]
    %v192 = vld [vmem:[%s0 + $0xb0] sm:$0xf]
    %v193 = vld [vmem:[%s0 + $0xb4] sm:$0xf]
    %v194 = vld [vmem:[%s0 + $0xb8] sm:$0xf]
    %v195 = vld [vmem:[%s0 + $0xbc] sm:$0xf]
    %v196 = vld [vmem:[%s0 + $0xc0] sm:$0xf]
    %v197 = vld [vmem:[%s0 + $0xc4] sm:$0xf]
    %v198 = vld [vmem:[%s0 + $0xc8] sm:$0xf]
    %v199 = vld [vmem:[%s0 + $0xcc] sm:$0xf]
    %v200 = vld [vmem:[%s0 + $0xd0] sm:$0xf]
    %v201 = vld [vmem:[%s0 + $0xd4] sm:$0xf]
    %v202 = vld [vmem:[%s0 + $0xd8] sm:$0xf]
    %v203 = vld [vmem:[%s0 + $0xdc] sm:$0xf]
    %v204 = vld [vmem:[%s0 + $0xe0] sm:$0xf]
    %v205 = vld [vmem:[%s0 + $0xe4] sm:$0xf]
    %v206 = vld [vmem:[%s0 + $0xe8] sm:$0xf]
    %v207 = vld [vmem:[%s0 + $0xec] sm:$0xf]
    %v208 = vld [vmem:[%s0 + $0xf0] sm:$0xf]
    %v209 = vld [vmem:[%s0 + $0xf4] sm:$0xf]
    %v210 = vld [vmem:[%s0 + $0xf8] sm:$0xf]
    %v211 = vld [vmem:[%s0 + $0xfc] sm:$0xf]
    %v212 = vld [vmem:[%s1] sm:$0xf]
    %v213 = vld [vmem:[%s1 + $0x4] sm:$0xf]
    %v214 = vld [vmem:[%s1 + $0x8] sm:$0xf]
    %v215 = vld [vmem:[%s1 + $0xc] sm:$0xf]
    %v280 = vunpack.c.l.b16 %v148
    %v281 = vunpack.c.l.b16 %v149
    %v282 = vunpack.c.l.b16 %v150
    %v283 = vunpack.c.l.b16 %v151
    %v284 = vunpack.c.l.b16 %v152
    %v285 = vunpack.c.l.b16 %v153
    %v286 = vunpack.c.l.b16 %v154
    %v287 = vunpack.c.l.b16 %v155
    %v288 = vunpack.c.l.b16 %v156
    %v289 = vunpack.c.l.b16 %v157
    %v290 = vunpack.c.l.b16 %v158
    %v291 = vunpack.c.l.b16 %v159
    %v292 = vunpack.c.l.b16 %v160
    %v293 = vunpack.c.l.b16 %v161
    %v294 = vunpack.c.l.b16 %v162
    %v295 = vunpack.c.l.b16 %v163
    %v296 = vunpack.c.l.b16 %v164
    %v297 = vunpack.c.l.b16 %v165
    %v298 = vunpack.c.l.b16 %v166
    %v299 = vunpack.c.l.b16 %v167
    %v300 = vunpack.c.l.b16 %v168
    %v301 = vunpack.c.l.b16 %v169
    %v302 = vunpack.c.l.b16 %v170
    %v303 = vunpack.c.l.b16 %v171
    %v304 = vunpack.c.l.b16 %v172
    %v305 = vunpack.c.l.b16 %v173
    %v306 = vunpack.c.l.b16 %v174
    %v307 = vunpack.c.l.b16 %v175
    %v308 = vunpack.c.l.b16 %v176
    %v309 = vunpack.c.l.b16 %v177
    %v310 = vunpack.c.l.b16 %v178
    %v311 = vunpack.c.l.b16 %v179
    %v312 = vunpack.c.l.b16 %v180
    %v313 = vunpack.c.l.b16 %v181
    %v314 = vunpack.c.l.b16 %v182
    %v315 = vunpack.c.l.b16 %v183
    %v316 = vunpack.c.l.b16 %v184
    %v317 = vunpack.c.l.b16 %v185
    %v318 = vunpack.c.l.b16 %v186
    %v319 = vunpack.c.l.b16 %v187
    %v320 = vunpack.c.l.b16 %v188
    %v321 = vunpack.c.l.b16 %v189
    %v322 = vunpack.c.l.b16 %v190
    %v323 = vunpack.c.l.b16 %v191
    %v324 = vunpack.c.l.b16 %v192
    %v325 = vunpack.c.l.b16 %v193
    %v326 = vunpack.c.l.b16 %v194
    %v327 = vunpack.c.l.b16 %v195
    %v328 = vunpack.c.l.b16 %v196
    %v329 = vunpack.c.l.b16 %v197
    %v330 = vunpack.c.l.b16 %v198
    %v331 = vunpack.c.l.b16 %v199
    %v332 = vunpack.c.l.b16 %v200
    %v333 = vunpack.c.l.b16 %v201
    %v334 = vunpack.c.l.b16 %v202
    %v335 = vunpack.c.l.b16 %v203
    %v336 = vunpack.c.l.b16 %v204
    %v337 = vunpack.c.l.b16 %v205
    %v338 = vunpack.c.l.b16 %v206
    %v339 = vunpack.c.l.b16 %v207
    %v340 = vunpack.c.l.b16 %v208
    %v341 = vunpack.c.l.b16 %v209
    %v342 = vunpack.c.l.b16 %v210
    %v343 = vunpack.c.l.b16 %v211
    %v344 = vpack.c.b16 %v281, %v280
    %v345 = vpack.c.b16 %v283, %v282
    %v346 = vpack.c.b16 %v285, %v284
    %v347 = vpack.c.b16 %v287, %v286
    %v348 = vpack.c.b16 %v289, %v288
    %v349 = vpack.c.b16 %v291, %v290
    %v350 = vpack.c.b16 %v293, %v292
    %v351 = vpack.c.b16 %v295, %v294
    %v352 = vpack.c.b16 %v297, %v296
    %v353 = vpack.c.b16 %v299, %v298
    %v354 = vpack.c.b16 %v301, %v300
    %v355 = vpack.c.b16 %v303, %v302
    %v356 = vpack.c.b16 %v305, %v304
    %v357 = vpack.c.b16 %v307, %v306
    %v358 = vpack.c.b16 %v309, %v308
    %v359 = vpack.c.b16 %v311, %v310
    %v360 = vpack.c.b16 %v313, %v312
    %v361 = vpack.c.b16 %v315, %v314
    %v362 = vpack.c.b16 %v317, %v316
    %v363 = vpack.c.b16 %v319, %v318
    %v364 = vpack.c.b16 %v321, %v320
    %v365 = vpack.c.b16 %v323, %v322
    %v366 = vpack.c.b16 %v325, %v324
    %v367 = vpack.c.b16 %v327, %v326
    %v368 = vpack.c.b16 %v329, %v328
    %v369 = vpack.c.b16 %v331, %v330
    %v370 = vpack.c.b16 %v333, %v332
    %v371 = vpack.c.b16 %v335, %v334
    %v372 = vpack.c.b16 %v337, %v336
    %v373 = vpack.c.b16 %v339, %v338
    %v374 = vpack.c.b16 %v341, %v340
    %v375 = vpack.c.b16 %v343, %v342
    %v380 = vunpack.c.l.b16 %v212
    %v381 = vunpack.c.l.b16 %v213
    %v382 = vunpack.c.l.b16 %v214
    %v383 = vunpack.c.l.b16 %v215
    %v384 = vpack.c.b16 %v381, %v380
    %v385 = vpack.c.b16 %v383, %v382
    %vm388 = vcmask 261120
    %v390 = vsel %vm388, %v344, 0
    %v393 = vsel %vm388, %v345, 0
    %v396 = vsel %vm388, %v346, 0
    %v399 = vsel %vm388, %v347, 0
    %v402 = vsel %vm388, %v348, 0
    %v405 = vsel %vm388, %v349, 0
    %v408 = vsel %vm388, %v350, 0
    %v411 = vsel %vm388, %v351, 0
    %v414 = vsel %vm388, %v352, 0
    %v417 = vsel %vm388, %v353, 0
    %v420 = vsel %vm388, %v354, 0
    %v423 = vsel %vm388, %v355, 0
    %v426 = vsel %vm388, %v356, 0
    %v429 = vsel %vm388, %v357, 0
    %v432 = vsel %vm388, %v358, 0
    %v435 = vsel %vm388, %v359, 0
    %v438 = vsel %vm388, %v360, 0
    %v441 = vsel %vm388, %v361, 0
    %v444 = vsel %vm388, %v362, 0
    %v447 = vsel %vm388, %v363, 0
    %v450 = vsel %vm388, %v364, 0
    %v453 = vsel %vm388, %v365, 0
    %v456 = vsel %vm388, %v366, 0
    %v459 = vsel %vm388, %v367, 0
    %v462 = vsel %vm388, %v368, 0
    %v465 = vsel %vm388, %v369, 0
    %v468 = vsel %vm388, %v370, 0
    %v471 = vsel %vm388, %v371, 0
    %v474 = vsel %vm388, %v372, 0
    %v477 = vsel %vm388, %v373, 0
    %v480 = vsel %vm388, %v374, 0
    %v483 = vsel %vm388, %v375, 0
    %485 = vmatpush.bf16.msra.mxu0 0
    %486 = vmatpush.bf16.msra.mxu0 0
    %487 = vmatpush.bf16.msra.mxu0 0
    %488 = vmatpush.bf16.msra.mxu0 0
    %489 = vmatpush.bf16.msra.mxu0 0
    %490 = vmatpush.bf16.msra.mxu0 0
    %491 = vmatpush.bf16.msra.mxu0 %v385
    %492 = vmatpush.bf16.msra.mxu0 %v384
    %493 = vmatmul.bf16.gmra.mxu0 %v390
    %v494 = vpop.f32.mrf.mxu0
    %v495 = vadd.f32 0.0, %v494
    %v496 = vpop.f32.mrf.mxu0
    %v497 = vadd.f32 0.0, %v496
    %498 = vmatmul.bf16.gmra.mxu0 %v393
    %v499 = vpop.f32.mrf.mxu0
    %v500 = vadd.f32 0.0, %v499
    %v501 = vpop.f32.mrf.mxu0
    %v502 = vadd.f32 0.0, %v501
    %503 = vmatmul.bf16.gmra.mxu0 %v396
    %v504 = vpop.f32.mrf.mxu0
    %v505 = vadd.f32 0.0, %v504
    %v506 = vpop.f32.mrf.mxu0
    %v507 = vadd.f32 0.0, %v506
    %508 = vmatmul.bf16.gmra.mxu0 %v399
    %v509 = vpop.f32.mrf.mxu0
    %v510 = vadd.f32 0.0, %v509
    %v511 = vpop.f32.mrf.mxu0
    %v512 = vadd.f32 0.0, %v511
    %513 = vmatmul.bf16.gmra.mxu0 %v402
    %v514 = vpop.f32.mrf.mxu0
    %v515 = vadd.f32 0.0, %v514
    %v516 = vpop.f32.mrf.mxu0
    %v517 = vadd.f32 0.0, %v516
    %518 = vmatmul.bf16.gmra.mxu0 %v405
    %v519 = vpop.f32.mrf.mxu0
    %v520 = vadd.f32 0.0, %v519
    %v521 = vpop.f32.mrf.mxu0
    %v522 = vadd.f32 0.0, %v521
    %523 = vmatmul.bf16.gmra.mxu0 %v408
    %v524 = vpop.f32.mrf.mxu0
    %v525 = vadd.f32 0.0, %v524
    %v526 = vpop.f32.mrf.mxu0
    %v527 = vadd.f32 0.0, %v526
    %528 = vmatmul.bf16.gmra.mxu0 %v411
    %v529 = vpop.f32.mrf.mxu0
    %v530 = vadd.f32 0.0, %v529
    %v531 = vpop.f32.mrf.mxu0
    %v532 = vadd.f32 0.0, %v531
    %533 = vmatmul.bf16.gmra.mxu0 %v414
    %v534 = vpop.f32.mrf.mxu0
    %v535 = vadd.f32 0.0, %v534
    %v536 = vpop.f32.mrf.mxu0
    %v537 = vadd.f32 0.0, %v536
    %538 = vmatmul.bf16.gmra.mxu0 %v417
    %v539 = vpop.f32.mrf.mxu0
    %v540 = vadd.f32 0.0, %v539
    %v541 = vpop.f32.mrf.mxu0
    %v542 = vadd.f32 0.0, %v541
    %543 = vmatmul.bf16.gmra.mxu0 %v420
    %v544 = vpop.f32.mrf.mxu0
    %v545 = vadd.f32 0.0, %v544
    %v546 = vpop.f32.mrf.mxu0
    %v547 = vadd.f32 0.0, %v546
    %548 = vmatmul.bf16.gmra.mxu0 %v423
    %v549 = vpop.f32.mrf.mxu0
    %v550 = vadd.f32 0.0, %v549
    %v551 = vpop.f32.mrf.mxu0
    %v552 = vadd.f32 0.0, %v551
    %553 = vmatmul.bf16.gmra.mxu0 %v426
    %v554 = vpop.f32.mrf.mxu0
    %v555 = vadd.f32 0.0, %v554
    %v556 = vpop.f32.mrf.mxu0
    %v557 = vadd.f32 0.0, %v556
    %558 = vmatmul.bf16.gmra.mxu0 %v429
    %v559 = vpop.f32.mrf.mxu0
    %v560 = vadd.f32 0.0, %v559
    %v561 = vpop.f32.mrf.mxu0
    %v562 = vadd.f32 0.0, %v561
    %563 = vmatmul.bf16.gmra.mxu0 %v432
    %v564 = vpop.f32.mrf.mxu0
    %v565 = vadd.f32 0.0, %v564
    %v566 = vpop.f32.mrf.mxu0
    %v567 = vadd.f32 0.0, %v566
    %568 = vmatmul.bf16.gmra.mxu0 %v435
    %v569 = vpop.f32.mrf.mxu0
    %v570 = vadd.f32 0.0, %v569
    %v571 = vpop.f32.mrf.mxu0
    %v572 = vadd.f32 0.0, %v571
    %573 = vmatmul.bf16.gmra.mxu0 %v438
    %v574 = vpop.f32.mrf.mxu0
    %v575 = vadd.f32 0.0, %v574
    %v576 = vpop.f32.mrf.mxu0
    %v577 = vadd.f32 0.0, %v576
    %578 = vmatmul.bf16.gmra.mxu0 %v441
    %v579 = vpop.f32.mrf.mxu0
    %v580 = vadd.f32 0.0, %v579
    %v581 = vpop.f32.mrf.mxu0
    %v582 = vadd.f32 0.0, %v581
    %583 = vmatmul.bf16.gmra.mxu0 %v444
    %v584 = vpop.f32.mrf.mxu0
    %v585 = vadd.f32 0.0, %v584
    %v586 = vpop.f32.mrf.mxu0
    %v587 = vadd.f32 0.0, %v586
    %588 = vmatmul.bf16.gmra.mxu0 %v447
    %v589 = vpop.f32.mrf.mxu0
    %v590 = vadd.f32 0.0, %v589
    %v591 = vpop.f32.mrf.mxu0
    %v592 = vadd.f32 0.0, %v591
    %593 = vmatmul.bf16.gmra.mxu0 %v450
    %v594 = vpop.f32.mrf.mxu0
    %v595 = vadd.f32 0.0, %v594
    %v596 = vpop.f32.mrf.mxu0
    %v597 = vadd.f32 0.0, %v596
    %598 = vmatmul.bf16.gmra.mxu0 %v453
    %v599 = vpop.f32.mrf.mxu0
    %v600 = vadd.f32 0.0, %v599
    %v601 = vpop.f32.mrf.mxu0
    %v602 = vadd.f32 0.0, %v601
    %603 = vmatmul.bf16.gmra.mxu0 %v456
    %v604 = vpop.f32.mrf.mxu0
    %v605 = vadd.f32 0.0, %v604
    %v606 = vpop.f32.mrf.mxu0
    %v607 = vadd.f32 0.0, %v606
    %608 = vmatmul.bf16.gmra.mxu0 %v459
    %v609 = vpop.f32.mrf.mxu0
    %v610 = vadd.f32 0.0, %v609
    %v611 = vpop.f32.mrf.mxu0
    %v612 = vadd.f32 0.0, %v611
    %613 = vmatmul.bf16.gmra.mxu0 %v462
    %v614 = vpop.f32.mrf.mxu0
    %v615 = vadd.f32 0.0, %v614
    %v616 = vpop.f32.mrf.mxu0
    %v617 = vadd.f32 0.0, %v616
    %618 = vmatmul.bf16.gmra.mxu0 %v465
    %v619 = vpop.f32.mrf.mxu0
    %v620 = vadd.f32 0.0, %v619
    %v621 = vpop.f32.mrf.mxu0
    %v622 = vadd.f32 0.0, %v621
    %623 = vmatmul.bf16.gmra.mxu0 %v468
    %v624 = vpop.f32.mrf.mxu0
    %v625 = vadd.f32 0.0, %v624
    %v626 = vpop.f32.mrf.mxu0
    %v627 = vadd.f32 0.0, %v626
    %628 = vmatmul.bf16.gmra.mxu0 %v471
    %v629 = vpop.f32.mrf.mxu0
    %v630 = vadd.f32 0.0, %v629
    %v631 = vpop.f32.mrf.mxu0
    %v632 = vadd.f32 0.0, %v631
    %633 = vmatmul.bf16.gmra.mxu0 %v474
    %v634 = vpop.f32.mrf.mxu0
    %v635 = vadd.f32 0.0, %v634
    %v636 = vpop.f32.mrf.mxu0
    %v637 = vadd.f32 0.0, %v636
    %638 = vmatmul.bf16.gmra.mxu0 %v477
    %v639 = vpop.f32.mrf.mxu0
    %v640 = vadd.f32 0.0, %v639
    %v641 = vpop.f32.mrf.mxu0
    %v642 = vadd.f32 0.0, %v641
    %643 = vmatmul.bf16.gmra.mxu0 %v480
    %v644 = vpop.f32.mrf.mxu0
    %v645 = vadd.f32 0.0, %v644
    %v646 = vpop.f32.mrf.mxu0
    %v647 = vadd.f32 0.0, %v646
    %648 = vmatmul.bf16.gmra.mxu0 %v483
    %v649 = vpop.f32.mrf.mxu0
    %v650 = vadd.f32 0.0, %v649
    %v651 = vpop.f32.mrf.mxu0
    %v652 = vadd.f32 0.0, %v651
    %653 = vdwg.mxu0
    %v654 = vadd.f32 %v84, %v495
    %v655 = vadd.f32 %v85, %v497
    %v656 = vadd.f32 %v86, %v500
    %v657 = vadd.f32 %v87, %v502
    %v658 = vadd.f32 %v88, %v505
    %v659 = vadd.f32 %v89, %v507
    %v660 = vadd.f32 %v90, %v510
    %v661 = vadd.f32 %v91, %v512
    %v662 = vadd.f32 %v92, %v515
    %v663 = vadd.f32 %v93, %v517
    %v664 = vadd.f32 %v94, %v520
    %v665 = vadd.f32 %v95, %v522
    %v666 = vadd.f32 %v96, %v525
    %v667 = vadd.f32 %v97, %v527
    %v668 = vadd.f32 %v98, %v530
    %v669 = vadd.f32 %v99, %v532
    %v670 = vadd.f32 %v100, %v535
    %v671 = vadd.f32 %v101, %v537
    %v672 = vadd.f32 %v102, %v540
    %v673 = vadd.f32 %v103, %v542
    %v674 = vadd.f32 %v104, %v545
    %v675 = vadd.f32 %v105, %v547
    %v676 = vadd.f32 %v106, %v550
    %v677 = vadd.f32 %v107, %v552
    %v678 = vadd.f32 %v108, %v555
    %v679 = vadd.f32 %v109, %v557
    %v680 = vadd.f32 %v110, %v560
    %v681 = vadd.f32 %v111, %v562
    %v682 = vadd.f32 %v112, %v565
    %v683 = vadd.f32 %v113, %v567
    %v684 = vadd.f32 %v114, %v570
    %v685 = vadd.f32 %v115, %v572
    %v686 = vadd.f32 %v116, %v575
    %v687 = vadd.f32 %v117, %v577
    %v688 = vadd.f32 %v118, %v580
    %v689 = vadd.f32 %v119, %v582
    %v690 = vadd.f32 %v120, %v585
    %v691 = vadd.f32 %v121, %v587
    %v692 = vadd.f32 %v122, %v590
    %v693 = vadd.f32 %v123, %v592
    %v694 = vadd.f32 %v124, %v595
    %v695 = vadd.f32 %v125, %v597
    %v696 = vadd.f32 %v126, %v600
    %v697 = vadd.f32 %v127, %v602
    %v698 = vadd.f32 %v128, %v605
    %v699 = vadd.f32 %v129, %v607
    %v700 = vadd.f32 %v130, %v610
    %v701 = vadd.f32 %v131, %v612
    %v702 = vadd.f32 %v132, %v615
    %v703 = vadd.f32 %v133, %v617
    %v704 = vadd.f32 %v134, %v620
    %v705 = vadd.f32 %v135, %v622
    %v706 = vadd.f32 %v136, %v625
    %v707 = vadd.f32 %v137, %v627
    %v708 = vadd.f32 %v138, %v630
    %v709 = vadd.f32 %v139, %v632
    %v710 = vadd.f32 %v140, %v635
    %v711 = vadd.f32 %v141, %v637
    %v712 = vadd.f32 %v142, %v640
    %v713 = vadd.f32 %v143, %v642
    %v714 = vadd.f32 %v144, %v645
    %v715 = vadd.f32 %v145, %v647
    %v716 = vadd.f32 %v146, %v650
    %v717 = vadd.f32 %v147, %v652
    %718 = vst [vmem:[#allocation2] sm:$0xff] %v654
    %719 = vst [vmem:[#allocation2 + $0x8] sm:$0xff] %v655
    %720 = vst [vmem:[#allocation2 + $0x10] sm:$0xff] %v656
    %721 = vst [vmem:[#allocation2 + $0x18] sm:$0xff] %v657
    %722 = vst [vmem:[#allocation2 + $0x20] sm:$0xff] %v658
    %723 = vst [vmem:[#allocation2 + $0x28] sm:$0xff] %v659
    %724 = vst [vmem:[#allocation2 + $0x30] sm:$0xff] %v660
    %725 = vst [vmem:[#allocation2 + $0x38] sm:$0xff] %v661
    %726 = vst [vmem:[#allocation2 + $0x40] sm:$0xff] %v662
    %727 = vst [vmem:[#allocation2 + $0x48] sm:$0xff] %v663
    %728 = vst [vmem:[#allocation2 + $0x50] sm:$0xff] %v664
    %729 = vst [vmem:[#allocation2 + $0x58] sm:$0xff] %v665
    %730 = vst [vmem:[#allocation2 + $0x60] sm:$0xff] %v666
    %731 = vst [vmem:[#allocation2 + $0x68] sm:$0xff] %v667
    %732 = vst [vmem:[#allocation2 + $0x70] sm:$0xff] %v668
    %733 = vst [vmem:[#allocation2 + $0x78] sm:$0xff] %v669
    %734 = vst [vmem:[#allocation2 + $0x80] sm:$0xff] %v670
    %735 = vst [vmem:[#allocation2 + $0x88] sm:$0xff] %v671
    %736 = vst [vmem:[#allocation2 + $0x90] sm:$0xff] %v672
    %737 = vst [vmem:[#allocation2 + $0x98] sm:$0xff] %v673
    %738 = vst [vmem:[#allocation2 + $0xa0] sm:$0xff] %v674
    %739 = vst [vmem:[#allocation2 + $0xa8] sm:$0xff] %v675
    %740 = vst [vmem:[#allocation2 + $0xb0] sm:$0xff] %v676
    %741 = vst [vmem:[#allocation2 + $0xb8] sm:$0xff] %v677
    %742 = vst [vmem:[#allocation2 + $0xc0] sm:$0xff] %v678
    %743 = vst [vmem:[#allocation2 + $0xc8] sm:$0xff] %v679
    %744 = vst [vmem:[#allocation2 + $0xd0] sm:$0xff] %v680
    %745 = vst [vmem:[#allocation2 + $0xd8] sm:$0xff] %v681
    %746 = vst [vmem:[#allocation2 + $0xe0] sm:$0xff] %v682
    %747 = vst [vmem:[#allocation2 + $0xe8] sm:$0xff] %v683
    %748 = vst [vmem:[#allocation2 + $0xf0] sm:$0xff] %v684
    %749 = vst [vmem:[#allocation2 + $0xf8] sm:$0xff] %v685
    %750 = vst [vmem:[#allocation2 + $0x100] sm:$0xff] %v686
    %751 = vst [vmem:[#allocation2 + $0x108] sm:$0xff] %v687
    %752 = vst [vmem:[#allocation2 + $0x110] sm:$0xff] %v688
    %753 = vst [vmem:[#allocation2 + $0x118] sm:$0xff] %v689
    %754 = vst [vmem:[#allocation2 + $0x120] sm:$0xff] %v690
    %755 = vst [vmem:[#allocation2 + $0x128] sm:$0xff] %v691
    %756 = vst [vmem:[#allocation2 + $0x130] sm:$0xff] %v692
    %757 = vst [vmem:[#allocation2 + $0x138] sm:$0xff] %v693
    %758 = vst [vmem:[#allocation2 + $0x140] sm:$0xff] %v694
    %759 = vst [vmem:[#allocation2 + $0x148] sm:$0xff] %v695
    %760 = vst [vmem:[#allocation2 + $0x150] sm:$0xff] %v696
    %761 = vst [vmem:[#allocation2 + $0x158] sm:$0xff] %v697
    %762 = vst [vmem:[#allocation2 + $0x160] sm:$0xff] %v698
    %763 = vst [vmem:[#allocation2 + $0x168] sm:$0xff] %v699
    %764 = vst [vmem:[#allocation2 + $0x170] sm:$0xff] %v700
    %765 = vst [vmem:[#allocation2 + $0x178] sm:$0xff] %v701
    %766 = vst [vmem:[#allocation2 + $0x180] sm:$0xff] %v702
    %767 = vst [vmem:[#allocation2 + $0x188] sm:$0xff] %v703
    %768 = vst [vmem:[#allocation2 + $0x190] sm:$0xff] %v704
    %769 = vst [vmem:[#allocation2 + $0x198] sm:$0xff] %v705
    %770 = vst [vmem:[#allocation2 + $0x1a0] sm:$0xff] %v706
    %771 = vst [vmem:[#allocation2 + $0x1a8] sm:$0xff] %v707
    %772 = vst [vmem:[#allocation2 + $0x1b0] sm:$0xff] %v708
    %773 = vst [vmem:[#allocation2 + $0x1b8] sm:$0xff] %v709
    %774 = vst [vmem:[#allocation2 + $0x1c0] sm:$0xff] %v710
    %775 = vst [vmem:[#allocation2 + $0x1c8] sm:$0xff] %v711
    %776 = vst [vmem:[#allocation2 + $0x1d0] sm:$0xff] %v712
    %777 = vst [vmem:[#allocation2 + $0x1d8] sm:$0xff] %v713
    %778 = vst [vmem:[#allocation2 + $0x1e0] sm:$0xff] %v714
    %779 = vst [vmem:[#allocation2 + $0x1e8] sm:$0xff] %v715
    %780 = vst [vmem:[#allocation2 + $0x1f0] sm:$0xff] %v716
    %781 = vst [vmem:[#allocation2 + $0x1f8] sm:$0xff] %v717
    // Predicated region
    $region18: #{tpu_custom_call.1} parent=1 // pred_check
      %p782 = pneg %p16
    $region19: #{tpu_custom_call.1} parent=1 // pred_check_branch
      %784 = sbr.rel (%p782) target = $region21
    $region20: #{tpu_custom_call.1} parent=1 // pred_region
      %v785 = vld [vmem:[#allocation2] sm:$0xff]
      %v786 = vld [vmem:[#allocation2 + $0x8] sm:$0xff]
      %v787 = vld [vmem:[#allocation2 + $0x10] sm:$0xff]
      %v788 = vld [vmem:[#allocation2 + $0x18] sm:$0xff]
      %v789 = vld [vmem:[#allocation2 + $0x20] sm:$0xff]
      %v790 = vld [vmem:[#allocation2 + $0x28] sm:$0xff]
      %v791 = vld [vmem:[#allocation2 + $0x30] sm:$0xff]
      %v792 = vld [vmem:[#allocation2 + $0x38] sm:$0xff]
      %v793 = vld [vmem:[#allocation2 + $0x40] sm:$0xff]
      %v794 = vld [vmem:[#allocation2 + $0x48] sm:$0xff]
      %v795 = vld [vmem:[#allocation2 + $0x50] sm:$0xff]
      %v796 = vld [vmem:[#allocation2 + $0x58] sm:$0xff]
      %v797 = vld [vmem:[#allocation2 + $0x60] sm:$0xff]
      %v798 = vld [vmem:[#allocation2 + $0x68] sm:$0xff]
      %v799 = vld [vmem:[#allocation2 + $0x70] sm:$0xff]
      %v800 = vld [vmem:[#allocation2 + $0x78] sm:$0xff]
      %v801 = vld [vmem:[#allocation2 + $0x80] sm:$0xff]
      %v802 = vld [vmem:[#allocation2 + $0x88] sm:$0xff]
      %v803 = vld [vmem:[#allocation2 + $0x90] sm:$0xff]
      %v804 = vld [vmem:[#allocation2 + $0x98] sm:$0xff]
      %v805 = vld [vmem:[#allocation2 + $0xa0] sm:$0xff]
      %v806 = vld [vmem:[#allocation2 + $0xa8] sm:$0xff]
      %v807 = vld [vmem:[#allocation2 + $0xb0] sm:$0xff]
      %v808 = vld [vmem:[#allocation2 + $0xb8] sm:$0xff]
      %v809 = vld [vmem:[#allocation2 + $0xc0] sm:$0xff]
      %v810 = vld [vmem:[#allocation2 + $0xc8] sm:$0xff]
      %v811 = vld [vmem:[#allocation2 + $0xd0] sm:$0xff]
      %v812 = vld [vmem:[#allocation2 + $0xd8] sm:$0xff]
      %v813 = vld [vmem:[#allocation2 + $0xe0] sm:$0xff]
      %v814 = vld [vmem:[#allocation2 + $0xe8] sm:$0xff]
      %v815 = vld [vmem:[#allocation2 + $0xf0] sm:$0xff]
      %v816 = vld [vmem:[#allocation2 + $0xf8] sm:$0xff]
      %v817 = vld [vmem:[#allocation2 + $0x100] sm:$0xff]
      %v818 = vld [vmem:[#allocation2 + $0x108] sm:$0xff]
      %v819 = vld [vmem:[#allocation2 + $0x110] sm:$0xff]
      %v820 = vld [vmem:[#allocation2 + $0x118] sm:$0xff]
      %v821 = vld [vmem:[#allocation2 + $0x120] sm:$0xff]
      %v822 = vld [vmem:[#allocation2 + $0x128] sm:$0xff]
      %v823 = vld [vmem:[#allocation2 + $0x130] sm:$0xff]
      %v824 = vld [vmem:[#allocation2 + $0x138] sm:$0xff]
      %v825 = vld [vmem:[#allocation2 + $0x140] sm:$0xff]
      %v826 = vld [vmem:[#allocation2 + $0x148] sm:$0xff]
      %v827 = vld [vmem:[#allocation2 + $0x150] sm:$0xff]
      %v828 = vld [vmem:[#allocation2 + $0x158] sm:$0xff]
      %v829 = vld [vmem:[#allocation2 + $0x160] sm:$0xff]
      %v830 = vld [vmem:[#allocation2 + $0x168] sm:$0xff]
      %v831 = vld [vmem:[#allocation2 + $0x170] sm:$0xff]
      %v832 = vld [vmem:[#allocation2 + $0x178] sm:$0xff]
      %v833 = vld [vmem:[#allocation2 + $0x180] sm:$0xff]
      %v834 = vld [vmem:[#allocation2 + $0x188] sm:$0xff]
      %v835 = vld [vmem:[#allocation2 + $0x190] sm:$0xff]
      %v836 = vld [vmem:[#allocation2 + $0x198] sm:$0xff]
      %v837 = vld [vmem:[#allocation2 + $0x1a0] sm:$0xff]
      %v838 = vld [vmem:[#allocation2 + $0x1a8] sm:$0xff]
      %v839 = vld [vmem:[#allocation2 + $0x1b0] sm:$0xff]
      %v840 = vld [vmem:[#allocation2 + $0x1b8] sm:$0xff]
      %v841 = vld [vmem:[#allocation2 + $0x1c0] sm:$0xff]
      %v842 = vld [vmem:[#allocation2 + $0x1c8] sm:$0xff]
      %v843 = vld [vmem:[#allocation2 + $0x1d0] sm:$0xff]
      %v844 = vld [vmem:[#allocation2 + $0x1d8] sm:$0xff]
      %v845 = vld [vmem:[#allocation2 + $0x1e0] sm:$0xff]
      %v846 = vld [vmem:[#allocation2 + $0x1e8] sm:$0xff]
      %v847 = vld [vmem:[#allocation2 + $0x1f0] sm:$0xff]
      %v848 = vld [vmem:[#allocation2 + $0x1f8] sm:$0xff]
      %v849 = vld [vmem:[%s2] sm:$0x1]
      %v851 = vperm.slane %v849, 0
      %v853 = vadd.f32 %v785, %v851
      %v854 = vadd.f32 %v786, %v851
      %v855 = vadd.f32 %v787, %v851
      %v856 = vadd.f32 %v788, %v851
      %v857 = vadd.f32 %v789, %v851
      %v858 = vadd.f32 %v790, %v851
      %v859 = vadd.f32 %v791, %v851
      %v860 = vadd.f32 %v792, %v851
      %v861 = vadd.f32 %v793, %v851
      %v862 = vadd.f32 %v794, %v851
      %v863 = vadd.f32 %v795, %v851
      %v864 = vadd.f32 %v796, %v851
      %v865 = vadd.f32 %v797, %v851
      %v866 = vadd.f32 %v798, %v851
      %v867 = vadd.f32 %v799, %v851
      %v868 = vadd.f32 %v800, %v851
      %v869 = vadd.f32 %v801, %v851
      %v870 = vadd.f32 %v802, %v851
      %v871 = vadd.f32 %v803, %v851
      %v872 = vadd.f32 %v804, %v851
      %v873 = vadd.f32 %v805, %v851
      %v874 = vadd.f32 %v806, %v851
      %v875 = vadd.f32 %v807, %v851
      %v876 = vadd.f32 %v808, %v851
      %v877 = vadd.f32 %v809, %v851
      %v878 = vadd.f32 %v810, %v851
      %v879 = vadd.f32 %v811, %v851
      %v880 = vadd.f32 %v812, %v851
      %v881 = vadd.f32 %v813, %v851
      %v882 = vadd.f32 %v814, %v851
      %v883 = vadd.f32 %v815, %v851
      %v884 = vadd.f32 %v816, %v851
      %v885 = vadd.f32 %v817, %v851
      %v886 = vadd.f32 %v818, %v851
      %v887 = vadd.f32 %v819, %v851
      %v888 = vadd.f32 %v820, %v851
      %v889 = vadd.f32 %v821, %v851
      %v890 = vadd.f32 %v822, %v851
      %v891 = vadd.f32 %v823, %v851
      %v892 = vadd.f32 %v824, %v851
      %v893 = vadd.f32 %v825, %v851
      %v894 = vadd.f32 %v826, %v851
      %v895 = vadd.f32 %v827, %v851
      %v896 = vadd.f32 %v828, %v851
      %v897 = vadd.f32 %v829, %v851
      %v898 = vadd.f32 %v830, %v851
      %v899 = vadd.f32 %v831, %v851
      %v900 = vadd.f32 %v832, %v851
      %v901 = vadd.f32 %v833, %v851
      %v902 = vadd.f32 %v834, %v851
      %v903 = vadd.f32 %v835, %v851
      %v904 = vadd.f32 %v836, %v851
      %v905 = vadd.f32 %v837, %v851
      %v906 = vadd.f32 %v838, %v851
      %v907 = vadd.f32 %v839, %v851
      %v908 = vadd.f32 %v840, %v851
      %v909 = vadd.f32 %v841, %v851
      %v910 = vadd.f32 %v842, %v851
      %v911 = vadd.f32 %v843, %v851
      %v912 = vadd.f32 %v844, %v851
      %v913 = vadd.f32 %v845, %v851
      %v914 = vadd.f32 %v846, %v851
      %v915 = vadd.f32 %v847, %v851
      %v916 = vadd.f32 %v848, %v851
      %v917 = vmax.f32 %v853, 0.0
      %v918 = vmax.f32 %v854, 0.0
      %v919 = vmax.f32 %v855, 0.0
      %v920 = vmax.f32 %v856, 0.0
      %v921 = vmax.f32 %v857, 0.0
      %v922 = vmax.f32 %v858, 0.0
      %v923 = vmax.f32 %v859, 0.0
      %v924 = vmax.f32 %v860, 0.0
      %v925 = vmax.f32 %v861, 0.0
      %v926 = vmax.f32 %v862, 0.0
      %v927 = vmax.f32 %v863, 0.0
      %v928 = vmax.f32 %v864, 0.0
      %v929 = vmax.f32 %v865, 0.0
      %v930 = vmax.f32 %v866, 0.0
      %v931 = vmax.f32 %v867, 0.0
      %v932 = vmax.f32 %v868, 0.0
      %v933 = vmax.f32 %v869, 0.0
      %v934 = vmax.f32 %v870, 0.0
      %v935 = vmax.f32 %v871, 0.0
      %v936 = vmax.f32 %v872, 0.0
      %v937 = vmax.f32 %v873, 0.0
      %v938 = vmax.f32 %v874, 0.0
      %v939 = vmax.f32 %v875, 0.0
      %v940 = vmax.f32 %v876, 0.0
      %v941 = vmax.f32 %v877, 0.0
      %v942 = vmax.f32 %v878, 0.0
      %v943 = vmax.f32 %v879, 0.0
      %v944 = vmax.f32 %v880, 0.0
      %v945 = vmax.f32 %v881, 0.0
      %v946 = vmax.f32 %v882, 0.0
      %v947 = vmax.f32 %v883, 0.0
      %v948 = vmax.f32 %v884, 0.0
      %v949 = vmax.f32 %v885, 0.0
      %v950 = vmax.f32 %v886, 0.0
      %v951 = vmax.f32 %v887, 0.0
      %v952 = vmax.f32 %v888, 0.0
      %v953 = vmax.f32 %v889, 0.0
      %v954 = vmax.f32 %v890, 0.0
      %v955 = vmax.f32 %v891, 0.0
      %v956 = vmax.f32 %v892, 0.0
      %v957 = vmax.f32 %v893, 0.0
      %v958 = vmax.f32 %v894, 0.0
      %v959 = vmax.f32 %v895, 0.0
      %v960 = vmax.f32 %v896, 0.0
      %v961 = vmax.f32 %v897, 0.0
      %v962 = vmax.f32 %v898, 0.0
      %v963 = vmax.f32 %v899, 0.0
      %v964 = vmax.f32 %v900, 0.0
      %v965 = vmax.f32 %v901, 0.0
      %v966 = vmax.f32 %v902, 0.0
      %v967 = vmax.f32 %v903, 0.0
      %v968 = vmax.f32 %v904, 0.0
      %v969 = vmax.f32 %v905, 0.0
      %v970 = vmax.f32 %v906, 0.0
      %v971 = vmax.f32 %v907, 0.0
      %v972 = vmax.f32 %v908, 0.0
      %v973 = vmax.f32 %v909, 0.0
      %v974 = vmax.f32 %v910, 0.0
      %v975 = vmax.f32 %v911, 0.0
      %v976 = vmax.f32 %v912, 0.0
      %v977 = vmax.f32 %v913, 0.0
      %v978 = vmax.f32 %v914, 0.0
      %v979 = vmax.f32 %v915, 0.0
      %v980 = vmax.f32 %v916, 0.0
      %v981 = vmin.f32 %v917, 6.0
      %v982 = vmin.f32 %v918, 6.0
      %v983 = vmin.f32 %v919, 6.0
      %v984 = vmin.f32 %v920, 6.0
      %v985 = vmin.f32 %v921, 6.0
      %v986 = vmin.f32 %v922, 6.0
      %v987 = vmin.f32 %v923, 6.0
      %v988 = vmin.f32 %v924, 6.0
      %v989 = vmin.f32 %v925, 6.0
      %v990 = vmin.f32 %v926, 6.0
      %v991 = vmin.f32 %v927, 6.0
      %v992 = vmin.f32 %v928, 6.0
      %v993 = vmin.f32 %v929, 6.0
      %v994 = vmin.f32 %v930, 6.0
      %v995 = vmin.f32 %v931, 6.0
      %v996 = vmin.f32 %v932, 6.0
      %v997 = vmin.f32 %v933, 6.0
      %v998 = vmin.f32 %v934, 6.0
      %v999 = vmin.f32 %v935, 6.0
      %v1000 = vmin.f32 %v936, 6.0
      %v1001 = vmin.f32 %v937, 6.0
      %v1002 = vmin.f32 %v938, 6.0
      %v1003 = vmin.f32 %v939, 6.0
      %v1004 = vmin.f32 %v940, 6.0
      %v1005 = vmin.f32 %v941, 6.0
      %v1006 = vmin.f32 %v942, 6.0
      %v1007 = vmin.f32 %v943, 6.0
      %v1008 = vmin.f32 %v944, 6.0
      %v1009 = vmin.f32 %v945, 6.0
      %v1010 = vmin.f32 %v946, 6.0
      %v1011 = vmin.f32 %v947, 6.0
      %v1012 = vmin.f32 %v948, 6.0
      %v1013 = vmin.f32 %v949, 6.0
      %v1014 = vmin.f32 %v950, 6.0
      %v1015 = vmin.f32 %v951, 6.0
      %v1016 = vmin.f32 %v952, 6.0
      %v1017 = vmin.f32 %v953, 6.0
      %v1018 = vmin.f32 %v954, 6.0
      %v1019 = vmin.f32 %v955, 6.0
      %v1020 = vmin.f32 %v956, 6.0
      %v1021 = vmin.f32 %v957, 6.0
      %v1022 = vmin.f32 %v958, 6.0
      %v1023 = vmin.f32 %v959, 6.0
      %v1024 = vmin.f32 %v960, 6.0
      %v1025 = vmin.f32 %v961, 6.0
      %v1026 = vmin.f32 %v962, 6.0
      %v1027 = vmin.f32 %v963, 6.0
      %v1028 = vmin.f32 %v964, 6.0
      %v1029 = vmin.f32 %v965, 6.0
      %v1030 = vmin.f32 %v966, 6.0
      %v1031 = vmin.f32 %v967, 6.0
      %v1032 = vmin.f32 %v968, 6.0
      %v1033 = vmin.f32 %v969, 6.0
      %v1034 = vmin.f32 %v970, 6.0
      %v1035 = vmin.f32 %v971, 6.0
      %v1036 = vmin.f32 %v972, 6.0
      %v1037 = vmin.f32 %v973, 6.0
      %v1038 = vmin.f32 %v974, 6.0
      %v1039 = vmin.f32 %v975, 6.0
      %v1040 = vmin.f32 %v976, 6.0
      %v1041 = vmin.f32 %v977, 6.0
      %v1042 = vmin.f32 %v978, 6.0
      %v1043 = vmin.f32 %v979, 6.0
      %v1044 = vmin.f32 %v980, 6.0
      %v1045 = vpack.c.bf16 %v981, %v981
      %v1046 = vpack.c.bf16 %v982, %v982
      %v1047 = vpack.c.bf16 %v983, %v983
      %v1048 = vpack.c.bf16 %v984, %v984
      %v1049 = vpack.c.bf16 %v985, %v985
      %v1050 = vpack.c.bf16 %v986, %v986
      %v1051 = vpack.c.bf16 %v987, %v987
      %v1052 = vpack.c.bf16 %v988, %v988
      %v1053 = vpack.c.bf16 %v989, %v989
      %v1054 = vpack.c.bf16 %v990, %v990
      %v1055 = vpack.c.bf16 %v991, %v991
      %v1056 = vpack.c.bf16 %v992, %v992
      %v1057 = vpack.c.bf16 %v993, %v993
      %v1058 = vpack.c.bf16 %v994, %v994
      %v1059 = vpack.c.bf16 %v995, %v995
      %v1060 = vpack.c.bf16 %v996, %v996
      %v1061 = vpack.c.bf16 %v997, %v997
      %v1062 = vpack.c.bf16 %v998, %v998
      %v1063 = vpack.c.bf16 %v999, %v999
      %v1064 = vpack.c.bf16 %v1000, %v1000
      %v1065 = vpack.c.bf16 %v1001, %v1001
      %v1066 = vpack.c.bf16 %v1002, %v1002
      %v1067 = vpack.c.bf16 %v1003, %v1003
      %v1068 = vpack.c.bf16 %v1004, %v1004
      %v1069 = vpack.c.bf16 %v1005, %v1005
      %v1070 = vpack.c.bf16 %v1006, %v1006
      %v1071 = vpack.c.bf16 %v1007, %v1007
      %v1072 = vpack.c.bf16 %v1008, %v1008
      %v1073 = vpack.c.bf16 %v1009, %v1009
      %v1074 = vpack.c.bf16 %v1010, %v1010
      %v1075 = vpack.c.bf16 %v1011, %v1011
      %v1076 = vpack.c.bf16 %v1012, %v1012
      %v1077 = vpack.c.bf16 %v1013, %v1013
      %v1078 = vpack.c.bf16 %v1014, %v1014
      %v1079 = vpack.c.bf16 %v1015, %v1015
      %v1080 = vpack.c.bf16 %v1016, %v1016
      %v1081 = vpack.c.bf16 %v1017, %v1017
      %v1082 = vpack.c.bf16 %v1018, %v1018
      %v1083 = vpack.c.bf16 %v1019, %v1019
      %v1084 = vpack.c.bf16 %v1020, %v1020
      %v1085 = vpack.c.bf16 %v1021, %v1021
      %v1086 = vpack.c.bf16 %v1022, %v1022
      %v1087 = vpack.c.bf16 %v1023, %v1023
      %v1088 = vpack.c.bf16 %v1024, %v1024
      %v1089 = vpack.c.bf16 %v1025, %v1025
      %v1090 = vpack.c.bf16 %v1026, %v1026
      %v1091 = vpack.c.bf16 %v1027, %v1027
      %v1092 = vpack.c.bf16 %v1028, %v1028
      %v1093 = vpack.c.bf16 %v1029, %v1029
      %v1094 = vpack.c.bf16 %v1030, %v1030
      %v1095 = vpack.c.bf16 %v1031, %v1031
      %v1096 = vpack.c.bf16 %v1032, %v1032
      %v1097 = vpack.c.bf16 %v1033, %v1033
      %v1098 = vpack.c.bf16 %v1034, %v1034
      %v1099 = vpack.c.bf16 %v1035, %v1035
      %v1100 = vpack.c.bf16 %v1036, %v1036
      %v1101 = vpack.c.bf16 %v1037, %v1037
      %v1102 = vpack.c.bf16 %v1038, %v1038
      %v1103 = vpack.c.bf16 %v1039, %v1039
      %v1104 = vpack.c.bf16 %v1040, %v1040
      %v1105 = vpack.c.bf16 %v1041, %v1041
      %v1106 = vpack.c.bf16 %v1042, %v1042
      %v1107 = vpack.c.bf16 %v1043, %v1043
      %v1108 = vpack.c.bf16 %v1044, %v1044
      %1109 = vst [vmem:[#allocation3] sm:$0xf] %v1045
      %1110 = vst [vmem:[#allocation3 + $0x4] sm:$0xf] %v1046
      %1111 = vst [vmem:[#allocation3 + $0x8] sm:$0xf] %v1047
      %1112 = vst [vmem:[#allocation3 + $0xc] sm:$0xf] %v1048
      %1113 = vst [vmem:[#allocation3 + $0x10] sm:$0xf] %v1049
      %1114 = vst [vmem:[#allocation3 + $0x14] sm:$0xf] %v1050
      %1115 = vst [vmem:[#allocation3 + $0x18] sm:$0xf] %v1051
      %1116 = vst [vmem:[#allocation3 + $0x1c] sm:$0xf] %v1052
      %1117 = vst [vmem:[#allocation3 + $0x20] sm:$0xf] %v1053
      %1118 = vst [vmem:[#allocation3 + $0x24] sm:$0xf] %v1054
      %1119 = vst [vmem:[#allocation3 + $0x28] sm:$0xf] %v1055
      %1120 = vst [vmem:[#allocation3 + $0x2c] sm:$0xf] %v1056
      %1121 = vst [vmem:[#allocation3 + $0x30] sm:$0xf] %v1057
      %1122 = vst [vmem:[#allocation3 + $0x34] sm:$0xf] %v1058
      %1123 = vst [vmem:[#allocation3 + $0x38] sm:$0xf] %v1059
      %1124 = vst [vmem:[#allocation3 + $0x3c] sm:$0xf] %v1060
      %1125 = vst [vmem:[#allocation3 + $0x40] sm:$0xf] %v1061
      %1126 = vst [vmem:[#allocation3 + $0x44] sm:$0xf] %v1062
      %1127 = vst [vmem:[#allocation3 + $0x48] sm:$0xf] %v1063
      %1128 = vst [vmem:[#allocation3 + $0x4c] sm:$0xf] %v1064
      %1129 = vst [vmem:[#allocation3 + $0x50] sm:$0xf] %v1065
      %1130 = vst [vmem:[#allocation3 + $0x54] sm:$0xf] %v1066
      %1131 = vst [vmem:[#allocation3 + $0x58] sm:$0xf] %v1067
      %1132 = vst [vmem:[#allocation3 + $0x5c] sm:$0xf] %v1068
      %1133 = vst [vmem:[#allocation3 + $0x60] sm:$0xf] %v1069
      %1134 = vst [vmem:[#allocation3 + $0x64] sm:$0xf] %v1070
      %1135 = vst [vmem:[#allocation3 + $0x68] sm:$0xf] %v1071
      %1136 = vst [vmem:[#allocation3 + $0x6c] sm:$0xf] %v1072
      %1137 = vst [vmem:[#allocation3 + $0x70] sm:$0xf] %v1073
      %1138 = vst [vmem:[#allocation3 + $0x74] sm:$0xf] %v1074
      %1139 = vst [vmem:[#allocation3 + $0x78] sm:$0xf] %v1075
      %1140 = vst [vmem:[#allocation3 + $0x7c] sm:$0xf] %v1076
      %1141 = vst [vmem:[#allocation3 + $0x80] sm:$0xf] %v1077
      %1142 = vst [vmem:[#allocation3 + $0x84] sm:$0xf] %v1078
      %1143 = vst [vmem:[#allocation3 + $0x88] sm:$0xf] %v1079
      %1144 = vst [vmem:[#allocation3 + $0x8c] sm:$0xf] %v1080
      %1145 = vst [vmem:[#allocation3 + $0x90] sm:$0xf] %v1081
      %1146 = vst [vmem:[#allocation3 + $0x94] sm:$0xf] %v1082
      %1147 = vst [vmem:[#allocation3 + $0x98] sm:$0xf] %v1083
      %1148 = vst [vmem:[#allocation3 + $0x9c] sm:$0xf] %v1084
      %1149 = vst [vmem:[#allocation3 + $0xa0] sm:$0xf] %v1085
      %1150 = vst [vmem:[#allocation3 + $0xa4] sm:$0xf] %v1086
      %1151 = vst [vmem:[#allocation3 + $0xa8] sm:$0xf] %v1087
      %1152 = vst [vmem:[#allocation3 + $0xac] sm:$0xf] %v1088
      %1153 = vst [vmem:[#allocation3 + $0xb0] sm:$0xf] %v1089
      %1154 = vst [vmem:[#allocation3 + $0xb4] sm:$0xf] %v1090
      %1155 = vst [vmem:[#allocation3 + $0xb8] sm:$0xf] %v1091
      %1156 = vst [vmem:[#allocation3 + $0xbc] sm:$0xf] %v1092
      %1157 = vst [vmem:[#allocation3 + $0xc0] sm:$0xf] %v1093
      %1158 = vst [vmem:[#allocation3 + $0xc4] sm:$0xf] %v1094
      %1159 = vst [vmem:[#allocation3 + $0xc8] sm:$0xf] %v1095
      %1160 = vst [vmem:[#allocation3 + $0xcc] sm:$0xf] %v1096
      %1161 = vst [vmem:[#allocation3 + $0xd0] sm:$0xf] %v1097
      %1162 = vst [vmem:[#allocation3 + $0xd4] sm:$0xf] %v1098
      %1163 = vst [vmem:[#allocation3 + $0xd8] sm:$0xf] %v1099
      %1164 = vst [vmem:[#allocation3 + $0xdc] sm:$0xf] %v1100
      %1165 = vst [vmem:[#allocation3 + $0xe0] sm:$0xf] %v1101
      %1166 = vst [vmem:[#allocation3 + $0xe4] sm:$0xf] %v1102
      %1167 = vst [vmem:[#allocation3 + $0xe8] sm:$0xf] %v1103
      %1168 = vst [vmem:[#allocation3 + $0xec] sm:$0xf] %v1104
      %1169 = vst [vmem:[#allocation3 + $0xf0] sm:$0xf] %v1105
      %1170 = vst [vmem:[#allocation3 + $0xf4] sm:$0xf] %v1106
      %1171 = vst [vmem:[#allocation3 + $0xf8] sm:$0xf] %v1107
      %1172 = vst [vmem:[#allocation3 + $0xfc] sm:$0xf] %v1108
    $region21: #{tpu_custom_call.1} parent=1 // pred_fallthru
      _
    // Predicated region
    $region22: #{tpu_custom_call.1} parent=1 // pred_check
      _
    $region23: #{tpu_custom_call.1} parent=1 // pred_check_branch
      %1174 = sbr.rel (0) target = $region25
    $region24: #{tpu_custom_call.1} parent=1 // pred_region
      %1176 = vsyncadd [#allocation4], 0
      %s1177 = sshll.u32 [#allocation3], 4
      %s1178 = int_to_ptr.vmem [resolvable:$true] %s1177
      %s1179 = sshll.u32 %s3, 4
      %s1180 = int_to_ptr.hbm [resolvable:$true] %s1179
      %1185 = dma.vmem_to_hbm [thread:$0]  %s1178, 4096, %s1180, [#allocation4], 64, 64, 4
    $region25: #{tpu_custom_call.1} parent=1 // pred_fallthru
      _
    // Predicated region
    $region26: #{tpu_custom_call.1} parent=1 // pred_check
      _
    $region27: #{tpu_custom_call.1} parent=1 // pred_check_branch
      %1187 = sbr.rel (0) target = $region29
    $region28: #{tpu_custom_call.1} parent=1 // pred_region
      %1189 = dma.done [#allocation4], 4096
    $region29: #{tpu_custom_call.1} parent=1 // pred_fallthru
      _
    %1190 = vsyncpa [#allocation4], 1

</llo_original>
